<compile_context>
chip_gen: v5e
topology: v5e:2x2
jax: 0.10.0
libtpu: 0.0.40
codegen_flags: <defaults>
</compile_context>

<pallas_src>
import functools
import math

import jax
import jax.numpy as jnp
from jax.experimental import pallas as pl
from jax.experimental.pallas import tpu as pltpu


_GELU_C = math.sqrt(2.0 / math.pi)
_STRIP = 512  # sub-strip width along the hidden dim inside the kernel body


def _gelu_tanh_f32(x):
    # GELU(tanh approx) in f32; 0.5*x*(1+tanh(u)) == x*sigmoid(2u) keeps the
    # transcendental on the EUP slot with fewer VPU ops.
    x = x.astype(jnp.float32)
    return x * jax.nn.sigmoid(2.0 * _GELU_C * (x + 0.044715 * (x * x * x)))


# ---------------------------------------------------------------------------
# Kernels
# ---------------------------------------------------------------------------
def _mlp_kernel_fused(x_ref, wfc_ref, bfc_ref, wproj_ref, bproj_ref, o_ref, *,
                      strip):
    # Resident-weight path: grid = (row_tiles,), weights fetched once.
    # x_ref:     (tm, C)  wfc_ref: (C, H)  bfc_ref: (1, H) f32
    # wproj_ref: (H, C)   bproj_ref: (1, C) f32   o_ref: (tm, C)
    x = x_ref[...]
    H = wfc_ref.shape[1]
    acc = jnp.zeros((x.shape[0], o_ref.shape[1]), jnp.float32)
    for s0 in range(0, H, strip):
        s1 = min(s0 + strip, H)
        h = jnp.dot(x, wfc_ref[:, s0:s1], preferred_element_type=jnp.float32)
        h = h + bfc_ref[:, s0:s1]
        g = _gelu_tanh_f32(h)
        acc = acc + jnp.dot(g.astype(wproj_ref.dtype), wproj_ref[s0:s1, :],
                            preferred_element_type=jnp.float32)
    o_ref[...] = (acc + bproj_ref[...]).astype(o_ref.dtype)


def _mlp_kernel_chunked(x_ref, wfc_ref, bfc_ref, wproj_ref, bproj_ref, o_ref,
                        acc_ref, *, strip):
    # Chunked-reduction path: grid = (row_tiles, hidden_chunks); the hidden
    # axis is the trailing "arbitrary" reduction accumulated into f32 scratch.
    k = pl.program_id(1)

    @pl.when(k == 0)
    def _init():
        acc_ref[...] = jnp.zeros_like(acc_ref)

    x = x_ref[...]
    th = wfc_ref.shape[1]
    acc = acc_ref[...]
    for s0 in range(0, th, strip):
        s1 = min(s0 + strip, th)
        h = jnp.dot(x, wfc_ref[:, s0:s1], preferred_element_type=jnp.float32)
        h = h + bfc_ref[:, s0:s1]                 # c_fc bias per hidden chunk
        g = _gelu_tanh_f32(h)
        acc = acc + jnp.dot(g.astype(wproj_ref.dtype), wproj_ref[s0:s1, :],
                            preferred_element_type=jnp.float32)
    acc_ref[...] = acc

    @pl.when(k == pl.num_programs(1) - 1)
    def _finalize():
        # c_proj bias added exactly once per output tile.
        o_ref[...] = (acc_ref[...] + bproj_ref[...]).astype(o_ref.dtype)


# ---------------------------------------------------------------------------
# Tiling / VMEM heuristics
# ---------------------------------------------------------------------------
def _round_up(x, m):
    return ((x + m - 1) // m) * m


def _vmem_budget_and_limit():
    """Generation-specific (tile budget bytes, compiler vmem_limit_bytes)."""
    try:
        cap = pltpu.get_tpu_info().vmem_capacity_bytes
    except Exception:
        cap = 64 * 2**20  # conservative: v7x is 64 MiB per TensorCore
    if cap >= 128 * 2**20:           # v5e / v6e: 128 MiB physical VMEM
        return 88 * 2**20, 100 * 2**20
    return 40 * 2**20, 52 * 2**20    # v7x: leave headroom under 64 MiB/TC


def _choose_tiles(M, C, H, comp_itemsize, out_itemsize, budget):
    """Pick (row_tile tm, hidden_chunk th) under the VMEM budget."""
    row_q = 16 if comp_itemsize < 4 else 8      # sublane packing granularity
    tm = min(1024, _round_up(M, row_q))

    # Prefer th == H (weights fully resident, DMA'd once); otherwise multiples
    # of 256 for the 2x256^2 MXU; 128 only as a last resort.
    cands = [H] + [t for t in (2048, 1536, 1024, 512, 256, 128)
                   if t < H and H % t == 0]

    def vmem_bytes(tm_, th_):
        strip = min(_STRIP, th_)
        xb = 2 * tm_ * C * comp_itemsize          # x tile, double-buffered
        ob = 2 * tm_ * C * out_itemsize           # out tile, double-buffered
        wfc = 2 * C * th_ * comp_itemsize         # c_fc chunk, double-buffered
        wpj = 2 * th_ * C * comp_itemsize         # c_proj chunk, double-buffered
        bias = 2 * 8 * th_ * 4 + 2 * 8 * C * 4    # (1,*) blocks pad to 8 sublanes
        acc = tm_ * C * 4                         # f32 accumulator
        inter = 4 * tm_ * strip * 4               # h / gelu / cast f32 temporaries
        return xb + ob + wfc + wpj + bias + acc + inter

    # Shrink th first (weight HBM traffic ~ ceil(M/tm), independent of th);
    # shrink tm only as a last resort.
    ti, th = 0, cands[0]
    while vmem_bytes(tm, th) > budget and ti + 1 < len(cands):
        ti += 1
        th = cands[ti]
    while vmem_bytes(tm, th) > budget and tm > row_q:
        tm = max(row_q, tm // 2)
    return tm, th


# ---------------------------------------------------------------------------
# Wrapper
# ---------------------------------------------------------------------------
def mlp_pallas(x, w_fc, b_fc, w_proj, b_proj, *, compute_dtype=jnp.bfloat16):
    """nanoGPT MLP forward: GELU_tanh(x @ w_fc + b_fc) @ w_proj + b_proj.

    x: [B, T, C]; weights in [in, out] layout. Matmul operands are cast once
    to `compute_dtype` (bf16 default -> MXU native path); accumulation and
    GELU are f32. Returns [B, T, C] in x.dtype.
    """
    B, T, C = x.shape
    H = w_fc.shape[1]                      # 4 * C
    M = B * T
    out_dtype = x.dtype

    # Cast operands exactly once at the pallas_call boundary.
    x2d = x.reshape(M, C).astype(compute_dtype)
    w_fc_c = w_fc.astype(compute_dtype)
    w_proj_c = w_proj.astype(compute_dtype)
    b_fc_f = b_fc.reshape(1, H).astype(jnp.float32)
    b_proj_f = b_proj.reshape(1, C).astype(jnp.float32)

    comp_itemsize = jnp.dtype(compute_dtype).itemsize
    out_itemsize = jnp.dtype(out_dtype).itemsize
    budget, vmem_limit = _vmem_budget_and_limit()
    tm, th = _choose_tiles(M, C, H, comp_itemsize, out_itemsize, budget)
    strip = min(_STRIP, th)
    row_tiles = pl.cdiv(M, tm)

    weight_streams = 1 if th == H else row_tiles
    cost = pl.CostEstimate(
        flops=4 * M * C * H,                              # two matmuls
        transcendentals=M * H,                            # one sigmoid/tanh each
        bytes_accessed=(M * C * comp_itemsize             # x read
                        + M * C * out_itemsize            # out write
                        + weight_streams * 2 * C * H * comp_itemsize
                        + (H + C) * 4),                   # biases (f32)
    )

    if th == H:
        # Resident weights: collapse the reduction axis entirely.
        grid_spec = pltpu.PrefetchScalarGridSpec(
            num_scalar_prefetch=0,
            grid=(row_tiles,),
            in_specs=[
                pl.BlockSpec((tm, C), lambda i: (i, 0)),   # x rows
                pl.BlockSpec((C, H), lambda i: (0, 0)),    # w_fc (grid-invariant)
                pl.BlockSpec((1, H), lambda i: (0, 0)),    # b_fc
                pl.BlockSpec((H, C), lambda i: (0, 0)),    # w_proj (grid-invariant)
                pl.BlockSpec((1, C), lambda i: (0, 0)),    # b_proj
            ],
            out_specs=pl.BlockSpec((tm, C), lambda i: (i, 0)),
        )
        kernel = functools.partial(_mlp_kernel_fused, strip=strip)
        dim_sem = ("parallel",)
    else:
        grid_spec = pltpu.PrefetchScalarGridSpec(
            num_scalar_prefetch=0,
            grid=(row_tiles, H // th),                     # reduction axis last
            in_specs=[
                pl.BlockSpec((tm, C), lambda i, k: (i, 0)),   # x rows (k-invariant)
                pl.BlockSpec((C, th), lambda i, k: (0, k)),   # w_fc chunk
                pl.BlockSpec((1, th), lambda i, k: (0, k)),   # b_fc chunk
                pl.BlockSpec((th, C), lambda i, k: (k, 0)),   # w_proj chunk
                pl.BlockSpec((1, C), lambda i, k: (0, 0)),    # b_proj (constant)
            ],
            out_specs=pl.BlockSpec((tm, C), lambda i, k: (i, 0)),
            scratch_shapes=[pltpu.VMEM((tm, C), jnp.float32)],
        )
        kernel = functools.partial(_mlp_kernel_chunked, strip=strip)
        dim_sem = ("parallel", "arbitrary")

    out2d = pl.pallas_call(
        kernel,
        out_shape=jax.ShapeDtypeStruct((M, C), out_dtype),
        grid_spec=grid_spec,
        compiler_params=pltpu.CompilerParams(
            dimension_semantics=dim_sem,
            vmem_limit_bytes=vmem_limit,
        ),
        cost_estimate=cost,
    )(x2d, w_fc_c, b_fc_f, w_proj_c, b_proj_f)
    return out2d.reshape(B, T, C)


def mlp_reference(x, w_fc, b_fc, w_proj, b_proj):
    h = jnp.einsum("btc,ch->bth", x, w_fc) + b_fc[0]
    g = 0.5 * h * (1.0 + jnp.tanh(_GELU_C * (h + 0.044715 * h * h * h)))
    return jnp.einsum("bth,hc->btc", g, w_proj) + b_proj[0]


if __name__ == "__main__":
    # Small config consistent with the module: n_embd=32, hidden=4*32=128.
    B, T, C = 2, 8, 32
    H = 4 * C

    key = jax.random.PRNGKey(0)
    kx, k1, k2, k3, k4 = jax.random.split(key, 5)

    x = jax.random.normal(kx, (B, T, C), dtype=jnp.float32)

    # Deterministic parameter init (PyTorch Linear-like uniform bounds),
    # stored as [in, out] so the kernel uses them directly.
    bound_fc = 1.0 / math.sqrt(C)
    bound_pj = 1.0 / math.sqrt(H)
    w_fc = jax.random.uniform(k1, (C, H), jnp.float32, -bound_fc, bound_fc)
    b_fc = jax.random.uniform(k2, (1, H), jnp.float32, -bound_fc, bound_fc)
    w_proj = jax.random.uniform(k3, (H, C), jnp.float32, -bound_pj, bound_pj)
    b_proj = jax.random.uniform(k4, (1, C), jnp.float32, -bound_pj, bound_pj)

    ref = mlp_reference(x, w_fc, b_fc, w_proj, b_proj)

    # Production path: bf16 MXU operands, f32 accumulation.
    out_bf16 = mlp_pallas(x, w_fc, b_fc, w_proj, b_proj,
                          compute_dtype=jnp.bfloat16)
    out_bf16 = jax.block_until_ready(out_bf16)
    assert out_bf16.shape == (B, T, C)
    assert jnp.allclose(out_bf16, ref, atol=5e-2, rtol=5e-2), \
        "bf16 path mismatch vs reference"

    # Exactness check on the f32 operand path.
    out_f32 = mlp_pallas(x, w_fc, b_fc, w_proj, b_proj,
                         compute_dtype=jnp.float32)
    out_f32 = jax.block_until_ready(out_f32)
    assert jnp.allclose(out_f32, ref, atol=1e-4, rtol=1e-4), \
        "f32 path mismatch vs reference"

    print("KERNEL_OK")
</pallas_src>

<mosaic_0001>
module attributes {stable_mosaic.version = 11 : i64} {
  func.func @_mlp_kernel_fused(%arg0: i32, %arg1: memref<16x32xbf16, #tpu.memory_space<vmem>>, %arg2: memref<32x128xbf16, #tpu.memory_space<vmem>>, %arg3: memref<1x128xf32, #tpu.memory_space<vmem>>, %arg4: memref<128x32xbf16, #tpu.memory_space<vmem>>, %arg5: memref<1x32xf32, #tpu.memory_space<vmem>>, %arg6: memref<16x32xf32, #tpu.memory_space<vmem>>) attributes {dimension_semantics = [#tpu.dimension_semantics<parallel>], iteration_bounds = array<i64: 1>, scalar_prefetch = 0 : i64, scratch_operands = 0 : i64, tpu.core_type = #tpu.core_type<tc>, window_params = [{transform_indices = @transform_0, window_bounds = array<i64: 16, 32>}, {pipeline_mode = #tpu.pipeline_mode<synchronous>, transform_indices = @transform_1, window_bounds = array<i64: 32, 128>}, {pipeline_mode = #tpu.pipeline_mode<synchronous>, transform_indices = @transform_2, window_bounds = array<i64: 1, 128>}, {pipeline_mode = #tpu.pipeline_mode<synchronous>, transform_indices = @transform_3, window_bounds = array<i64: 128, 32>}, {pipeline_mode = #tpu.pipeline_mode<synchronous>, transform_indices = @transform_4, window_bounds = array<i64: 1, 32>}, {transform_indices = @transform_5, window_bounds = array<i64: 16, 32>}]} {
    %c0 = arith.constant 0 : index
    %c0_0 = arith.constant 0 : index
    %0 = vector.load %arg1[%c0, %c0_0] : memref<16x32xbf16, #tpu.memory_space<vmem>>, vector<16x32xbf16>
    %cst = arith.constant 0.000000e+00 : f32
    %1 = vector.broadcast %cst : f32 to vector<16x32xf32>
    %c0_1 = arith.constant 0 : index
    %c0_2 = arith.constant 0 : index
    %2 = vector.load %arg2[%c0_1, %c0_2] : memref<32x128xbf16, #tpu.memory_space<vmem>>, vector<32x128xbf16>
    %cst_3 = arith.constant dense<0.000000e+00> : vector<16x128xf32>
    %3 = tpu.matmul %0, %2, %cst_3 {dimension_numbers = #tpu.dot_dimension_numbers<[1], [0], [0], [1], [0, 0, 1, 1], [], []>} : vector<16x32xbf16>, vector<32x128xbf16>, vector<16x128xf32> -> vector<16x128xf32>
    %c0_4 = arith.constant 0 : index
    %c0_5 = arith.constant 0 : index
    %4 = vector.load %arg3[%c0_4, %c0_5] : memref<1x128xf32, #tpu.memory_space<vmem>>, vector<1x128xf32>
    %5 = vector.broadcast %4 : vector<1x128xf32> to vector<16x128xf32>
    %6 = arith.addf %3, %5 : vector<16x128xf32>
    %7 = arith.mulf %6, %6 : vector<16x128xf32>
    %8 = arith.mulf %7, %6 : vector<16x128xf32>
    %cst_6 = arith.constant 4.471500e-02 : f32
    %9 = vector.broadcast %cst_6 : f32 to vector<16x128xf32>
    %10 = arith.mulf %9, %8 : vector<16x128xf32>
    %11 = arith.addf %6, %10 : vector<16x128xf32>
    %cst_7 = arith.constant 1.59576917 : f32
    %12 = vector.broadcast %cst_7 : f32 to vector<16x128xf32>
    %13 = arith.mulf %12, %11 : vector<16x128xf32>
    %14 = arith.negf %13 : vector<16x128xf32>
    %15 = math.exp %14 : vector<16x128xf32>
    %cst_8 = arith.constant 1.000000e+00 : f32
    %16 = vector.broadcast %cst_8 : f32 to vector<16x128xf32>
    %17 = arith.addf %16, %15 : vector<16x128xf32>
    %18 = arith.divf %16, %17 : vector<16x128xf32>
    %19 = arith.mulf %6, %18 : vector<16x128xf32>
    %20 = arith.truncf %19 : vector<16x128xf32> to vector<16x128xbf16>
    %c0_9 = arith.constant 0 : index
    %c0_10 = arith.constant 0 : index
    %21 = vector.load %arg4[%c0_9, %c0_10] : memref<128x32xbf16, #tpu.memory_space<vmem>>, vector<128x32xbf16>
    %cst_11 = arith.constant dense<0.000000e+00> : vector<16x32xf32>
    %22 = tpu.matmul %20, %21, %cst_11 {dimension_numbers = #tpu.dot_dimension_numbers<[1], [0], [0], [1], [0, 0, 1, 1], [], []>} : vector<16x128xbf16>, vector<128x32xbf16>, vector<16x32xf32> -> vector<16x32xf32>
    %23 = arith.addf %1, %22 : vector<16x32xf32>
    %c0_12 = arith.constant 0 : index
    %c0_13 = arith.constant 0 : index
    %24 = vector.load %arg5[%c0_12, %c0_13] : memref<1x32xf32, #tpu.memory_space<vmem>>, vector<1x32xf32>
    %25 = vector.broadcast %24 : vector<1x32xf32> to vector<16x32xf32>
    %26 = arith.addf %23, %25 : vector<16x32xf32>
    %c0_14 = arith.constant 0 : index
    %c0_15 = arith.constant 0 : index
    %27 = vector.load %arg6[%c0_14, %c0_15] : memref<16x32xf32, #tpu.memory_space<vmem>>, vector<16x32xf32>
    tpu.vector_store %arg6[%c0_14, %c0_15], %26 {strides = array<i32>} : memref<16x32xf32, #tpu.memory_space<vmem>>, vector<16x32xf32>,
    return
  }
  func.func @transform_0(%arg0: i32) -> (i32, i32) {
    %c0_i32 = arith.constant 0 : i32
    %c0_i32_0 = arith.constant 0 : i32
    return %arg0, %c0_i32 : i32, i32
  }
  func.func @transform_1(%arg0: i32) -> (i32, i32) {
    %c0_i32 = arith.constant 0 : i32
    %c0_i32_0 = arith.constant 0 : i32
    %c0_i32_1 = arith.constant 0 : i32
    return %c0_i32, %c0_i32_0 : i32, i32
  }
  func.func @transform_2(%arg0: i32) -> (i32, i32) {
    %c0_i32 = arith.constant 0 : i32
    %c0_i32_0 = arith.constant 0 : i32
    %c0_i32_1 = arith.constant 0 : i32
    return %c0_i32, %c0_i32_0 : i32, i32
  }
  func.func @transform_3(%arg0: i32) -> (i32, i32) {
    %c0_i32 = arith.constant 0 : i32
    %c0_i32_0 = arith.constant 0 : i32
    %c0_i32_1 = arith.constant 0 : i32
    return %c0_i32, %c0_i32_0 : i32, i32
  }
  func.func @transform_4(%arg0: i32) -> (i32, i32) {
    %c0_i32 = arith.constant 0 : i32
    %c0_i32_0 = arith.constant 0 : i32
    %c0_i32_1 = arith.constant 0 : i32
    return %c0_i32, %c0_i32_0 : i32, i32
  }
  func.func @transform_5(%arg0: i32) -> (i32, i32) {
    %c0_i32 = arith.constant 0 : i32
    %c0_i32_0 = arith.constant 0 : i32
    return %arg0, %c0_i32 : i32, i32
  }
}

</mosaic_0001>

<llo_original>
// kernel: tpu_custom_call.1
$region0: #{tpu_custom_call.1}
  #allocation0 [shape = 'u32[]', space=smem, size = 0x4, offset = 0x4, fixed_abs, tag = 'smem constant byte address 0x4 - core index']
  #allocation1 [shape = 'u32[72,128]{1,0:T(1,128)}', space=vmem, size = 0x9000, scoped, tag = 'internal scratch']
  %s0 = inlined_call_operand.vmem [shape: bf16[16,32], index: 0, kind: input, shape index: {}]
  %s1 = inlined_call_operand.vmem [shape: bf16[32,128], index: 1, kind: input, shape index: {}]
  %s2 = inlined_call_operand.vmem [shape: f32[1,128], index: 2, kind: input, shape index: {}]
  %s3 = inlined_call_operand.vmem [shape: bf16[128,32], index: 3, kind: input, shape index: {}]
  %s4 = inlined_call_operand.vmem [shape: f32[1,32], index: 4, kind: input, shape index: {}]
  %s5 = inlined_call_operand.hbm [shape: f32[16,32], index: 5, kind: output, shape index: {}]
  %s6 = sld [smem:[#allocation0]]
  $region30: #{tpu_custom_call.1} parent=0
    _
  %s8 = ssub.s32 1, %s6
  %s9 = scalar_select 0, %s8, %s6
  $region1: #{tpu_custom_call.1} parent=0
    #allocation2 [shape = 'u8[8192]{0}', space=vmem, size = 0x2000, scoped, tag = 'output window, operand 0, single buffered']
    #allocation3 [shape = 's32[1]{0}', space=sflag, size = 0x4, scoped, tag = 'scoped memory for tpu_custom_call.1']
    %10 = vsyncpa [#allocation3], 0
    // Predicated region
    $region2: #{tpu_custom_call.1} parent=1 // pred_check
      _
    $region3: #{tpu_custom_call.1} parent=1 // pred_check_branch
      %12 = sbr.rel (0) target = $region5
    $region4: #{tpu_custom_call.1} parent=1 // pred_region
      _
    $region5: #{tpu_custom_call.1} parent=1 // pred_fallthru
      _
    // Predicated region
    $region6: #{tpu_custom_call.1} parent=1 // pred_check
      _
    $region7: #{tpu_custom_call.1} parent=1 // pred_check_branch
      %14 = sbr.rel (0) target = $region9
    $region8: #{tpu_custom_call.1} parent=1 // pred_region
      _
    $region9: #{tpu_custom_call.1} parent=1 // pred_fallthru
      _
    // Predicated region
    $region10: #{tpu_custom_call.1} parent=1 // pred_check
      _
    $region11: #{tpu_custom_call.1} parent=1 // pred_check_branch
      %16 = sbr.rel (0) target = $region13
    $region12: #{tpu_custom_call.1} parent=1 // pred_region
      _
    $region13: #{tpu_custom_call.1} parent=1 // pred_fallthru
      _
    // Predicated region
    $region14: #{tpu_custom_call.1} parent=1 // pred_check
      _
    $region15: #{tpu_custom_call.1} parent=1 // pred_check_branch
      %18 = sbr.rel (0) target = $region17
    $region16: #{tpu_custom_call.1} parent=1 // pred_region
      _
    $region17: #{tpu_custom_call.1} parent=1 // pred_fallthru
      _
    // Predicated region
    $region18: #{tpu_custom_call.1} parent=1 // pred_check
      _
    $region19: #{tpu_custom_call.1} parent=1 // pred_check_branch
      %20 = sbr.rel (0) target = $region21
    $region20: #{tpu_custom_call.1} parent=1 // pred_region
      _
    $region21: #{tpu_custom_call.1} parent=1 // pred_fallthru
      _
    %v22 = vld [vmem:[%s0] sm:$0xf]
    %v23 = vld [vmem:[%s0 + $0x4] sm:$0xf]
    %v24 = vld [vmem:[%s1] sm:$0xf]
    %v25 = vld [vmem:[%s1 + $0x4] sm:$0xf]
    %v26 = vld [vmem:[%s1 + $0x8] sm:$0xf]
    %v27 = vld [vmem:[%s1 + $0xc] sm:$0xf]
    %v28 = vld [vmem:[%s2] sm:$0x1]
    %v30 = vperm.slane %v28, 0
    %v34 = vunpack.c.l.b16 %v22
    %v35 = vunpack.c.l.b16 %v23
    %v36 = vpack.c.b16 %v35, %v34
    %v41 = vunpack.c.l.b16 %v24
    %v42 = vunpack.c.l.b16 %v25
    %v43 = vunpack.c.l.b16 %v26
    %v44 = vunpack.c.l.b16 %v27
    %v45 = vpack.c.b16 %v42, %v41
    %v46 = vpack.c.b16 %v44, %v43
    %vm49 = vcmask 261120
    %v51 = vsel %vm49, %v36, 0
    %53 = vmatpush.bf16.msra.mxu0 0
    %54 = vmatpush.bf16.msra.mxu0 0
    %55 = vmatpush.bf16.msra.mxu0 0
    %56 = vmatpush.bf16.msra.mxu0 0
    %57 = vmatpush.bf16.msra.mxu0 0
    %58 = vmatpush.bf16.msra.mxu0 0
    %59 = vmatpush.bf16.msra.mxu0 %v46
    %60 = vmatpush.bf16.msra.mxu0 %v45
    %61 = vmatmul.bf16.gmra.mxu0 %v51
    %v62 = vpop.f32.mrf.mxu0
    %v63 = vadd.f32 %v30, %v62
    %v64 = vpop.f32.mrf.mxu0
    %v65 = vadd.f32 %v30, %v64
    %66 = vdwg.mxu0
    %v67 = vmul.f32 %v63, %v63
    %v68 = vmul.f32 %v65, %v65
    %v69 = vmul.f32 %v67, %v63
    %v70 = vmul.f32 %v68, %v65
    %v71 = vmul.f32 %v69, 0.044715
    %v72 = vmul.f32 %v70, 0.044715
    %v73 = vadd.f32 %v63, %v71
    %v74 = vadd.f32 %v65, %v72
    %v75 = vmul.f32 %v73, 1.5957692
    %v76 = vmul.f32 %v74, 1.5957692
    %v77 = vxor.u32 %v75, 2147483648
    %v78 = vxor.u32 %v76, 2147483648
    %v79 = vmul.f32 %v77, 1.442695
    %v80 = vpow.pop %v79
    %v81 = vmul.f32 %v78, 1.442695
    %v82 = vpow.pop %v81
    %v83 = vadd.f32 %v80, 1.0
    %v84 = vadd.f32 %v82, 1.0
    %v85 = vrcp.pop %v83
    %v86 = vmul.f32 %v83, %v85
    %v87 = vsub.f32 1.0, %v86
    %v88 = vmul.f32 %v85, %v87
    %v89 = vadd.f32 %v85, %v88
    %vm90 = vweird.f32 %v83
    %vm91 = vweird.f32 %v85
    %vm92 = vmor %vm90, %vm91
    %v93 = vsel %vm92, %v85, %v89
    %v94 = vand.u32 2147483647, %v83
    %vm95 = vcmp.eq.f32.partialorder %v94, 8.507059e+37
    %v96 = vand.u32 %v83, 2147483648
    %v97 = vor.u32 1.1754944e-38, %v96
    %v98 = vsel %vm95, %v97, %v93
    %v99 = vmul.f32 1.0, %v98
    %v100 = vrcp.pop %v84
    %v101 = vmul.f32 %v84, %v100
    %v102 = vsub.f32 1.0, %v101
    %v103 = vmul.f32 %v100, %v102
    %v104 = vadd.f32 %v100, %v103
    %vm105 = vweird.f32 %v84
    %vm106 = vweird.f32 %v100
    %vm107 = vmor %vm105, %vm106
    %v108 = vsel %vm107, %v100, %v104
    %v109 = vand.u32 2147483647, %v84
    %vm110 = vcmp.eq.f32.partialorder %v109, 8.507059e+37
    %v111 = vand.u32 %v84, 2147483648
    %v112 = vor.u32 1.1754944e-38, %v111
    %v113 = vsel %vm110, %v112, %v108
    %v114 = vmul.f32 1.0, %v113
    %v115 = vmul.f32 %v63, %v99
    %v116 = vmul.f32 %v65, %v114
    %v117 = vpack.c.bf16 %v116, %v115
    %v118 = vld [vmem:[%s3] sm:$0xf]
    %v119 = vld [vmem:[%s3 + $0x4] sm:$0xf]
    %v120 = vld [vmem:[%s3 + $0x8] sm:$0xf]
    %v121 = vld [vmem:[%s3 + $0xc] sm:$0xf]
    %v122 = vld [vmem:[%s3 + $0x10] sm:$0xf]
    %v123 = vld [vmem:[%s3 + $0x14] sm:$0xf]
    %v124 = vld [vmem:[%s3 + $0x18] sm:$0xf]
    %v125 = vld [vmem:[%s3 + $0x1c] sm:$0xf]
    %v126 = vld [vmem:[%s3 + $0x20] sm:$0xf]
    %v127 = vld [vmem:[%s3 + $0x24] sm:$0xf]
    %v128 = vld [vmem:[%s3 + $0x28] sm:$0xf]
    %v129 = vld [vmem:[%s3 + $0x2c] sm:$0xf]
    %v130 = vld [vmem:[%s3 + $0x30] sm:$0xf]
    %v131 = vld [vmem:[%s3 + $0x34] sm:$0xf]
    %v132 = vld [vmem:[%s3 + $0x38] sm:$0xf]
    %v133 = vld [vmem:[%s3 + $0x3c] sm:$0xf]
    %v134 = vld [vmem:[%s4] sm:$0x1]
    %v136 = vperm.slane %v134, 0
    %v154 = vunpack.c.l.b16 %v118
    %v155 = vunpack.c.l.b16 %v119
    %v156 = vunpack.c.l.b16 %v120
    %v157 = vunpack.c.l.b16 %v121
    %v158 = vunpack.c.l.b16 %v122
    %v159 = vunpack.c.l.b16 %v123
    %v160 = vunpack.c.l.b16 %v124
    %v161 = vunpack.c.l.b16 %v125
    %v162 = vunpack.c.l.b16 %v126
    %v163 = vunpack.c.l.b16 %v127
    %v164 = vunpack.c.l.b16 %v128
    %v165 = vunpack.c.l.b16 %v129
    %v166 = vunpack.c.l.b16 %v130
    %v167 = vunpack.c.l.b16 %v131
    %v168 = vunpack.c.l.b16 %v132
    %v169 = vunpack.c.l.b16 %v133
    %v170 = vpack.c.b16 %v155, %v154
    %v171 = vpack.c.b16 %v157, %v156
    %v172 = vpack.c.b16 %v159, %v158
    %v173 = vpack.c.b16 %v161, %v160
    %v174 = vpack.c.b16 %v163, %v162
    %v175 = vpack.c.b16 %v165, %v164
    %v176 = vpack.c.b16 %v167, %v166
    %v177 = vpack.c.b16 %v169, %v168
    %186 = vmatpush.bf16.msra.mxu0 %v177
    %187 = vmatpush.bf16.msra.mxu0 %v176
    %188 = vmatpush.bf16.msra.mxu0 %v175
    %189 = vmatpush.bf16.msra.mxu0 %v174
    %190 = vmatpush.bf16.msra.mxu0 %v173
    %191 = vmatpush.bf16.msra.mxu0 %v172
    %192 = vmatpush.bf16.msra.mxu0 %v171
    %193 = vmatpush.bf16.msra.mxu0 %v170
    %194 = vmatmul.bf16.gmra.mxu0 %v117
    %v195 = vpop.f32.mrf.mxu0
    %v196 = vadd.f32 %v136, %v195
    %v197 = vpop.f32.mrf.mxu0
    %v198 = vadd.f32 %v136, %v197
    %199 = vdwg.mxu0
    %200 = vst.msk [vmem:[#allocation2] sm:$0xff] %vm49, %v196
    %201 = vst.msk [vmem:[#allocation2 + $0x8] sm:$0xff] %vm49, %v198
    // Predicated region
    $region22: #{tpu_custom_call.1} parent=1 // pred_check
      _
    $region23: #{tpu_custom_call.1} parent=1 // pred_check_branch
      %203 = sbr.rel (0) target = $region25
    $region24: #{tpu_custom_call.1} parent=1 // pred_region
      %205 = vsyncadd [#allocation3], 0
      %s206 = sshll.u32 [#allocation2], 4
      %s207 = int_to_ptr.vmem [resolvable:$true] %s206
      %s208 = sshll.u32 %s5, 4
      %s209 = int_to_ptr.hbm [resolvable:$true] %s208
      %214 = dma.vmem_to_hbm [thread:$0]  %s207, 256, %s209, [#allocation3], 128, 128, 8
    $region25: #{tpu_custom_call.1} parent=1 // pred_fallthru
      _
    // Predicated region
    $region26: #{tpu_custom_call.1} parent=1 // pred_check
      _
    $region27: #{tpu_custom_call.1} parent=1 // pred_check_branch
      %216 = sbr.rel (0) target = $region29
    $region28: #{tpu_custom_call.1} parent=1 // pred_region
      %218 = dma.done [#allocation3], 256
    $region29: #{tpu_custom_call.1} parent=1 // pred_fallthru
      _
    %219 = vsyncpa [#allocation3], 1

</llo_original>
